<compile_context>
chip_gen: v7x
topology: tpu7x:2x2x1
jax: 0.10.0
libtpu: 0.0.40
codegen_flags: <defaults>
</compile_context>

<pallas_src>
import jax
import jax.numpy as jnp
from jax.experimental import pallas as pl
from jax.experimental.pallas import tpu as pltpu

LANE = 128


def _round_up(x, m):
    return (x + m - 1) // m * m


def _cdiv(a, b):
    return -(-a // b)


# ---------------------------------------------------------------------------
# Kernel
# ---------------------------------------------------------------------------
def _mlp_kernel(x_ref,
                w1_ref, b1_ref,
                w2_ref, b2_ref,
                w3_ref, b3_ref,
                w4_ref, b4_ref,
                o_ref):
    # bf16 operands -> MXU at full rate with f32 accumulation.
    # Bias-add + ReLU kept in f32 (v5e VPU has no bf16 ALU).
    h = jnp.dot(x_ref[...], w1_ref[...], preferred_element_type=jnp.float32)
    h = jnp.maximum(h + b1_ref[...], 0.0)

    h = jnp.dot(h.astype(jnp.bfloat16), w2_ref[...],
                preferred_element_type=jnp.float32)
    h = jnp.maximum(h + b2_ref[...], 0.0)

    h = jnp.dot(h.astype(jnp.bfloat16), w3_ref[...],
                preferred_element_type=jnp.float32)
    h = jnp.maximum(h + b3_ref[...], 0.0)

    h = jnp.dot(h.astype(jnp.bfloat16), w4_ref[...],
                preferred_element_type=jnp.float32)
    o_ref[...] = (h + b4_ref[...]).astype(o_ref.dtype)


# ---------------------------------------------------------------------------
# One-time parameter preparation (off the per-call path)
# ---------------------------------------------------------------------------
def prepare_params(params):
    """Pad hidden dims to 128 lanes and cast weights to bf16, ONCE.

    Layout: w1 (il, hl_p), w2/w3 (hl_p, hl_p), w4 (hl_p, ol); biases (1, F)
    in f32. Zero padding of hidden columns/rows is an exact no-op
    (relu(0 + 0) = 0 and zero rows contribute nothing).
    """
    il, hl = params["w1"].shape
    ol = params["w4"].shape[1]
    hl_p = _round_up(hl, LANE)

    def pad_w(w, rp, cp):
        r, c = w.shape
        return jnp.pad(w, ((0, rp - r), (0, cp - c))).astype(jnp.bfloat16)

    def pad_b(b, cp):
        b2d = b.reshape(1, -1).astype(jnp.float32)
        return jnp.pad(b2d, ((0, 0), (0, cp - b2d.shape[1])))

    return {
        "w1": pad_w(params["w1"], il, hl_p), "b1": pad_b(params["b1"], hl_p),
        "w2": pad_w(params["w2"], hl_p, hl_p), "b2": pad_b(params["b2"], hl_p),
        "w3": pad_w(params["w3"], hl_p, hl_p), "b3": pad_b(params["b3"], hl_p),
        "w4": pad_w(params["w4"], hl_p, ol), "b4": pad_b(params["b4"], ol),
    }


# ---------------------------------------------------------------------------
# Batch-tile choice
# ---------------------------------------------------------------------------
def _choose_batch_tile(B, block_b):
    # Tiny batches already aligned to the sublane: exact fit, no pad/slice.
    if B <= block_b and B < 512 and B % 8 == 0:
        return B
    if B <= block_b:
        if B >= 512:
            # >= 2 tiles so "parallel" shards across both v7x TensorCores.
            return _round_up(_cdiv(B, 2), 16)
        return _round_up(B, 16)
    n = _cdiv(B, block_b)
    n += n % 2  # even tile count pairs nicely across 2 TCs
    return _round_up(_cdiv(B, n), 16)


# ---------------------------------------------------------------------------
# Forward wrapper
# ---------------------------------------------------------------------------
def mlp_forward(x, prepared, *, block_b=1024):
    """x: (B, il) float32/bf16; prepared: output of prepare_params()."""
    B, il = x.shape
    w1, b1 = prepared["w1"], prepared["b1"]
    w2, b2 = prepared["w2"], prepared["b2"]
    w3, b3 = prepared["w3"], prepared["b3"]
    w4, b4 = prepared["w4"], prepared["b4"]
    hl_p = w1.shape[1]
    ol = w4.shape[1]
    hl = prepared["b4"].shape[1] if False else w4.shape[0]  # hl_p == w4.shape[0]

    tb = _choose_batch_tile(B, block_b)
    bp = _round_up(B, tb)
    n_tiles = bp // tb

    # Only the bf16 cast (plus a batch-row pad when bp > B); no lane padding.
    x_p = x.astype(jnp.bfloat16)
    if bp != B:
        x_p = jnp.pad(x_p, ((0, bp - B), (0, 0)))

    # Weights/biases: constant block index -> VMEM-resident across batch tiles.
    def resident(a):
        return pl.BlockSpec(a.shape, lambda i: (0, 0))

    in_specs = [pl.BlockSpec((tb, il), lambda i: (i, 0)),
                resident(w1), resident(b1),
                resident(w2), resident(b2),
                resident(w3), resident(b3),
                resident(w4), resident(b4)]
    out_spec = pl.BlockSpec((tb, ol), lambda i: (i, 0))

    # Advisory cost estimate (real, unpadded work).
    hl_true = w1.shape[1]  # padded; FLOP estimate uses padded dims (upper bound)
    flops = 2 * B * (il * hl_true + 2 * hl_true * hl_true + hl_true * ol)
    resident_bytes = sum(int(a.size) * a.dtype.itemsize
                         for a in (w1, b1, w2, b2, w3, b3, w4, b4))
    bytes_accessed = int(x_p.size) * 2 + bp * ol * 4 + resident_bytes
    cost = pl.CostEstimate(flops=flops, transcendentals=0,
                           bytes_accessed=bytes_accessed)

    # VMEM budget: 2x resident (default double-buffering) + double-buffered
    # x/out tiles + f32 intermediates headroom; clamp well under v7x's 64 MiB.
    stream_bytes = 2 * (tb * il * 2 + tb * ol * 4)
    interm_bytes = 4 * tb * hl_p * 4
    need = 2 * resident_bytes + stream_bytes + interm_bytes
    vmem_limit = int(min(48 * 2**20, max(16 * 2**20, 2 * need)))

    out = pl.pallas_call(
        _mlp_kernel,
        out_shape=jax.ShapeDtypeStruct((bp, ol), jnp.float32),
        grid_spec=pltpu.PrefetchScalarGridSpec(
            num_scalar_prefetch=0,
            grid=(n_tiles,),
            in_specs=in_specs,
            out_specs=out_spec,
        ),
        compiler_params=pltpu.CompilerParams(
            dimension_semantics=("parallel",),
            vmem_limit_bytes=vmem_limit,
        ),
        cost_estimate=cost,
    )(x_p, w1, b1, w2, b2, w3, b3, w4, b4)

    return out[:B] if bp != B else out


# ---------------------------------------------------------------------------
# Init + references
# ---------------------------------------------------------------------------
def init_params(key, il, hl, ol):
    """PyTorch nn.Linear default init: U(-1/sqrt(fan_in), 1/sqrt(fan_in))."""
    dims = [(il, hl), (hl, hl), (hl, hl), (hl, ol)]
    params = {}
    keys = jax.random.split(key, 2 * len(dims))
    for i, (fin, fout) in enumerate(dims):
        bound = 1.0 / jnp.sqrt(jnp.float32(fin))
        params[f"w{i + 1}"] = jax.random.uniform(
            keys[2 * i], (fin, fout), jnp.float32, minval=-bound, maxval=bound)
        params[f"b{i + 1}"] = jax.random.uniform(
            keys[2 * i + 1], (fout,), jnp.float32, minval=-bound, maxval=bound)
    return params


def mlp_reference_f32(x, params):
    h = x
    for i in range(1, 4):
        h = jnp.maximum(h @ params[f"w{i}"] + params[f"b{i}"][None, :], 0.0)
    return h @ params["w4"] + params["b4"][None, :]


def mlp_reference_bf16(x, params):
    """Reference mirroring the kernel's mixed precision (bf16 operands,
    f32 accumulation / bias / ReLU)."""
    bf = lambda a: a.astype(jnp.bfloat16).astype(jnp.float32)
    h = bf(x)
    for i in range(1, 4):
        h = jnp.maximum(h @ bf(params[f"w{i}"]) + params[f"b{i}"][None, :], 0.0)
        h = bf(h)
    return h @ bf(params["w4"]) + params["b4"][None, :]


if __name__ == "__main__":
    # Small shapes consistent with the module: il=16, hl=32, ol=4, batch=8.
    il, hl, ol, batch = 16, 32, 4, 8

    key = jax.random.PRNGKey(0)
    kx, kp = jax.random.split(key)

    x = jax.random.normal(kx, (batch, il), dtype=jnp.float32)
    params = init_params(kp, il, hl, ol)

    # One-time prep (pad + bf16 cast), then the per-call path is just the
    # pallas_call (+ a cheap bf16 cast of x).
    prepared = jax.tree_util.tree_map(jax.block_until_ready,
                                      prepare_params(params))

    fwd = jax.jit(mlp_forward)
    out = jax.block_until_ready(fwd(x, prepared))
    assert out.shape == (batch, ol)

    # Exact-path check vs a bf16-mirrored reference + loose check vs pure f32.
    ref_bf16 = mlp_reference_bf16(x, params)
    ref_f32 = mlp_reference_f32(x, params)
    assert jnp.allclose(out, ref_bf16, atol=1e-3, rtol=1e-3), \
        "mismatch vs bf16-mirrored reference"
    assert jnp.allclose(out, ref_f32, atol=5e-2, rtol=5e-2), \
        "mismatch vs f32 reference"

    print("KERNEL_OK")
</pallas_src>

<mosaic_0001>
module attributes {stable_mosaic.version = 11 : i64} {
  func.func @_mlp_kernel(%arg0: i32, %arg1: memref<8x16xbf16, #tpu.memory_space<vmem>>, %arg2: memref<16x128xbf16, #tpu.memory_space<vmem>>, %arg3: memref<1x128xf32, #tpu.memory_space<vmem>>, %arg4: memref<128x128xbf16, #tpu.memory_space<vmem>>, %arg5: memref<1x128xf32, #tpu.memory_space<vmem>>, %arg6: memref<128x128xbf16, #tpu.memory_space<vmem>>, %arg7: memref<1x128xf32, #tpu.memory_space<vmem>>, %arg8: memref<128x4xbf16, #tpu.memory_space<vmem>>, %arg9: memref<1x4xf32, #tpu.memory_space<vmem>>, %arg10: memref<8x4xf32, #tpu.memory_space<vmem>>) attributes {dimension_semantics = [#tpu.dimension_semantics<parallel>], iteration_bounds = array<i64: 1>, scalar_prefetch = 0 : i64, scratch_operands = 0 : i64, tpu.core_type = #tpu.core_type<tc>, window_params = [{transform_indices = @transform_0, window_bounds = array<i64: 8, 16>}, {pipeline_mode = #tpu.pipeline_mode<synchronous>, transform_indices = @transform_1, window_bounds = array<i64: 16, 128>}, {pipeline_mode = #tpu.pipeline_mode<synchronous>, transform_indices = @transform_2, window_bounds = array<i64: 1, 128>}, {pipeline_mode = #tpu.pipeline_mode<synchronous>, transform_indices = @transform_3, window_bounds = array<i64: 128, 128>}, {pipeline_mode = #tpu.pipeline_mode<synchronous>, transform_indices = @transform_4, window_bounds = array<i64: 1, 128>}, {pipeline_mode = #tpu.pipeline_mode<synchronous>, transform_indices = @transform_5, window_bounds = array<i64: 128, 128>}, {pipeline_mode = #tpu.pipeline_mode<synchronous>, transform_indices = @transform_6, window_bounds = array<i64: 1, 128>}, {pipeline_mode = #tpu.pipeline_mode<synchronous>, transform_indices = @transform_7, window_bounds = array<i64: 128, 4>}, {pipeline_mode = #tpu.pipeline_mode<synchronous>, transform_indices = @transform_8, window_bounds = array<i64: 1, 4>}, {transform_indices = @transform_9, window_bounds = array<i64: 8, 4>}]} {
    %c0 = arith.constant 0 : index
    %c0_0 = arith.constant 0 : index
    %0 = vector.load %arg1[%c0, %c0_0] : memref<8x16xbf16, #tpu.memory_space<vmem>>, vector<8x16xbf16>
    %c0_1 = arith.constant 0 : index
    %c0_2 = arith.constant 0 : index
    %1 = vector.load %arg2[%c0_1, %c0_2] : memref<16x128xbf16, #tpu.memory_space<vmem>>, vector<16x128xbf16>
    %cst = arith.constant dense<0.000000e+00> : vector<8x128xf32>
    %2 = tpu.matmul %0, %1, %cst {dimension_numbers = #tpu.dot_dimension_numbers<[1], [0], [0], [1], [0, 0, 1, 1], [], []>} : vector<8x16xbf16>, vector<16x128xbf16>, vector<8x128xf32> -> vector<8x128xf32>
    %c0_3 = arith.constant 0 : index
    %c0_4 = arith.constant 0 : index
    %3 = vector.load %arg3[%c0_3, %c0_4] : memref<1x128xf32, #tpu.memory_space<vmem>>, vector<1x128xf32>
    %4 = vector.broadcast %3 : vector<1x128xf32> to vector<8x128xf32>
    %5 = arith.addf %2, %4 : vector<8x128xf32>
    %cst_5 = arith.constant 0.000000e+00 : f32
    %6 = vector.broadcast %cst_5 : f32 to vector<8x128xf32>
    %7 = arith.maximumf %5, %6 : vector<8x128xf32>
    %8 = arith.truncf %7 : vector<8x128xf32> to vector<8x128xbf16>
    %c0_6 = arith.constant 0 : index
    %c0_7 = arith.constant 0 : index
    %9 = vector.load %arg4[%c0_6, %c0_7] : memref<128x128xbf16, #tpu.memory_space<vmem>>, vector<128x128xbf16>
    %cst_8 = arith.constant dense<0.000000e+00> : vector<8x128xf32>
    %10 = tpu.matmul %8, %9, %cst_8 {dimension_numbers = #tpu.dot_dimension_numbers<[1], [0], [0], [1], [0, 0, 1, 1], [], []>} : vector<8x128xbf16>, vector<128x128xbf16>, vector<8x128xf32> -> vector<8x128xf32>
    %c0_9 = arith.constant 0 : index
    %c0_10 = arith.constant 0 : index
    %11 = vector.load %arg5[%c0_9, %c0_10] : memref<1x128xf32, #tpu.memory_space<vmem>>, vector<1x128xf32>
    %12 = vector.broadcast %11 : vector<1x128xf32> to vector<8x128xf32>
    %13 = arith.addf %10, %12 : vector<8x128xf32>
    %cst_11 = arith.constant 0.000000e+00 : f32
    %14 = vector.broadcast %cst_11 : f32 to vector<8x128xf32>
    %15 = arith.maximumf %13, %14 : vector<8x128xf32>
    %16 = arith.truncf %15 : vector<8x128xf32> to vector<8x128xbf16>
    %c0_12 = arith.constant 0 : index
    %c0_13 = arith.constant 0 : index
    %17 = vector.load %arg6[%c0_12, %c0_13] : memref<128x128xbf16, #tpu.memory_space<vmem>>, vector<128x128xbf16>
    %cst_14 = arith.constant dense<0.000000e+00> : vector<8x128xf32>
    %18 = tpu.matmul %16, %17, %cst_14 {dimension_numbers = #tpu.dot_dimension_numbers<[1], [0], [0], [1], [0, 0, 1, 1], [], []>} : vector<8x128xbf16>, vector<128x128xbf16>, vector<8x128xf32> -> vector<8x128xf32>
    %c0_15 = arith.constant 0 : index
    %c0_16 = arith.constant 0 : index
    %19 = vector.load %arg7[%c0_15, %c0_16] : memref<1x128xf32, #tpu.memory_space<vmem>>, vector<1x128xf32>
    %20 = vector.broadcast %19 : vector<1x128xf32> to vector<8x128xf32>
    %21 = arith.addf %18, %20 : vector<8x128xf32>
    %cst_17 = arith.constant 0.000000e+00 : f32
    %22 = vector.broadcast %cst_17 : f32 to vector<8x128xf32>
    %23 = arith.maximumf %21, %22 : vector<8x128xf32>
    %24 = arith.truncf %23 : vector<8x128xf32> to vector<8x128xbf16>
    %c0_18 = arith.constant 0 : index
    %c0_19 = arith.constant 0 : index
    %25 = vector.load %arg8[%c0_18, %c0_19] : memref<128x4xbf16, #tpu.memory_space<vmem>>, vector<128x4xbf16>
    %cst_20 = arith.constant dense<0.000000e+00> : vector<8x4xf32>
    %26 = tpu.matmul %24, %25, %cst_20 {dimension_numbers = #tpu.dot_dimension_numbers<[1], [0], [0], [1], [0, 0, 1, 1], [], []>} : vector<8x128xbf16>, vector<128x4xbf16>, vector<8x4xf32> -> vector<8x4xf32>
    %c0_21 = arith.constant 0 : index
    %c0_22 = arith.constant 0 : index
    %27 = vector.load %arg9[%c0_21, %c0_22] : memref<1x4xf32, #tpu.memory_space<vmem>>, vector<1x4xf32>
    %28 = vector.broadcast %27 : vector<1x4xf32> to vector<8x4xf32>
    %29 = arith.addf %26, %28 : vector<8x4xf32>
    %c0_23 = arith.constant 0 : index
    %c0_24 = arith.constant 0 : index
    %30 = vector.load %arg10[%c0_23, %c0_24] : memref<8x4xf32, #tpu.memory_space<vmem>>, vector<8x4xf32>
    tpu.vector_store %arg10[%c0_23, %c0_24], %29 {strides = array<i32>} : memref<8x4xf32, #tpu.memory_space<vmem>>, vector<8x4xf32>,
    return
  }
  func.func @transform_0(%arg0: i32) -> (i32, i32) {
    %c0_i32 = arith.constant 0 : i32
    %c0_i32_0 = arith.constant 0 : i32
    return %arg0, %c0_i32 : i32, i32
  }
  func.func @transform_1(%arg0: i32) -> (i32, i32) {
    %c0_i32 = arith.constant 0 : i32
    %c0_i32_0 = arith.constant 0 : i32
    %c0_i32_1 = arith.constant 0 : i32
    return %c0_i32, %c0_i32_0 : i32, i32
  }
  func.func @transform_2(%arg0: i32) -> (i32, i32) {
    %c0_i32 = arith.constant 0 : i32
    %c0_i32_0 = arith.constant 0 : i32
    %c0_i32_1 = arith.constant 0 : i32
    return %c0_i32, %c0_i32_0 : i32, i32
  }
  func.func @transform_3(%arg0: i32) -> (i32, i32) {
    %c0_i32 = arith.constant 0 : i32
    %c0_i32_0 = arith.constant 0 : i32
    %c0_i32_1 = arith.constant 0 : i32
    return %c0_i32, %c0_i32_0 : i32, i32
  }
  func.func @transform_4(%arg0: i32) -> (i32, i32) {
    %c0_i32 = arith.constant 0 : i32
    %c0_i32_0 = arith.constant 0 : i32
    %c0_i32_1 = arith.constant 0 : i32
    return %c0_i32, %c0_i32_0 : i32, i32
  }
  func.func @transform_5(%arg0: i32) -> (i32, i32) {
    %c0_i32 = arith.constant 0 : i32
    %c0_i32_0 = arith.constant 0 : i32
    %c0_i32_1 = arith.constant 0 : i32
    return %c0_i32, %c0_i32_0 : i32, i32
  }
  func.func @transform_6(%arg0: i32) -> (i32, i32) {
    %c0_i32 = arith.constant 0 : i32
    %c0_i32_0 = arith.constant 0 : i32
    %c0_i32_1 = arith.constant 0 : i32
    return %c0_i32, %c0_i32_0 : i32, i32
  }
  func.func @transform_7(%arg0: i32) -> (i32, i32) {
    %c0_i32 = arith.constant 0 : i32
    %c0_i32_0 = arith.constant 0 : i32
    %c0_i32_1 = arith.constant 0 : i32
    return %c0_i32, %c0_i32_0 : i32, i32
  }
  func.func @transform_8(%arg0: i32) -> (i32, i32) {
    %c0_i32 = arith.constant 0 : i32
    %c0_i32_0 = arith.constant 0 : i32
    %c0_i32_1 = arith.constant 0 : i32
    return %c0_i32, %c0_i32_0 : i32, i32
  }
  func.func @transform_9(%arg0: i32) -> (i32, i32) {
    %c0_i32 = arith.constant 0 : i32
    %c0_i32_0 = arith.constant 0 : i32
    return %arg0, %c0_i32 : i32, i32
  }
}

</mosaic_0001>

<llo_original>
// kernel: mlp_forward.1
$region0: #{mlp_forward.1}
  #allocation0 [shape = 'u32[]', space=smem, size = 0x4, offset = 0x4, fixed_abs, tag = 'smem constant byte address 0x4 - core index']
  #allocation1 [shape = 'u32[144,128]{1,0:T(1,128)}', space=vmem, size = 0x12000, scoped, tag = 'internal scratch']
  %s0 = inlined_call_operand.vmem [shape: bf16[8,16], index: 0, kind: input, shape index: {}]
  %s1 = inlined_call_operand.vmem [shape: bf16[16,128], index: 1, kind: input, shape index: {}]
  %s2 = inlined_call_operand.vmem [shape: f32[1,128], index: 2, kind: input, shape index: {}]
  %s3 = inlined_call_operand.vmem [shape: bf16[128,128], index: 3, kind: input, shape index: {}]
  %s4 = inlined_call_operand.vmem [shape: f32[1,128], index: 4, kind: input, shape index: {}]
  %s5 = inlined_call_operand.hbm [shape: bf16[128,128], index: 5, kind: input, shape index: {}]
  %s6 = inlined_call_operand.vmem [shape: f32[1,128], index: 6, kind: input, shape index: {}]
  %s7 = inlined_call_operand.vmem [shape: bf16[128,4], index: 7, kind: input, shape index: {}]
  %s8 = inlined_call_operand.vmem [shape: f32[1,4], index: 8, kind: input, shape index: {}]
  %s9 = inlined_call_operand.vmem [shape: f32[8,4], index: 9, kind: output, shape index: {}]
  %s10 = sld [smem:[#allocation0]]
  $region50: #{mlp_forward.1} parent=0
    _
  %s12 = ssub.s32 1, %s10
  %s13 = scalar_select 0, %s12, %s10
  $region1: #{mlp_forward.1} parent=0
    #allocation2 [shape = 'u8[32768]{0}', space=vmem, size = 0x8000, scoped, tag = 'input window, operand 5, single buffered']
    #allocation3 [shape = 's32[1]{0}', space=sflag, size = 0x4, scoped, tag = 'scoped memory for mlp_forward.1']
    %14 = vsyncpa [#allocation3], 0
    // Predicated region
    $region2: #{mlp_forward.1} parent=1 // pred_check
      _
    $region3: #{mlp_forward.1} parent=1 // pred_check_branch
      %16 = sbr.rel (0) target = $region5
    $region4: #{mlp_forward.1} parent=1 // pred_region
      _
    $region5: #{mlp_forward.1} parent=1 // pred_fallthru
      _
    // Predicated region
    $region6: #{mlp_forward.1} parent=1 // pred_check
      _
    $region7: #{mlp_forward.1} parent=1 // pred_check_branch
      %18 = sbr.rel (0) target = $region9
    $region8: #{mlp_forward.1} parent=1 // pred_region
      _
    $region9: #{mlp_forward.1} parent=1 // pred_fallthru
      _
    // Predicated region
    $region10: #{mlp_forward.1} parent=1 // pred_check
      _
    $region11: #{mlp_forward.1} parent=1 // pred_check_branch
      %20 = sbr.rel (0) target = $region13
    $region12: #{mlp_forward.1} parent=1 // pred_region
      _
    $region13: #{mlp_forward.1} parent=1 // pred_fallthru
      _
    // Predicated region
    $region14: #{mlp_forward.1} parent=1 // pred_check
      _
    $region15: #{mlp_forward.1} parent=1 // pred_check_branch
      %22 = sbr.rel (0) target = $region17
    $region16: #{mlp_forward.1} parent=1 // pred_region
      _
    $region17: #{mlp_forward.1} parent=1 // pred_fallthru
      _
    // Predicated region
    $region18: #{mlp_forward.1} parent=1 // pred_check
      _
    $region19: #{mlp_forward.1} parent=1 // pred_check_branch
      %24 = sbr.rel (0) target = $region21
    $region20: #{mlp_forward.1} parent=1 // pred_region
      _
    $region21: #{mlp_forward.1} parent=1 // pred_fallthru
      _
    // Predicated region
    $region22: #{mlp_forward.1} parent=1 // pred_check
      _
    $region23: #{mlp_forward.1} parent=1 // pred_check_branch
      %26 = sbr.rel (0) target = $region25
    $region24: #{mlp_forward.1} parent=1 // pred_region
      %s28 = ssub.s32 1024, 1024
      %29 = vsyncadd [#allocation3], %s28
      %s30 = sshll.u32 [#allocation2], 4
      %s31 = int_to_ptr.vmem [resolvable:$true] %s30
      %36 = dma.hbm_to_vmem [thread:$0]  %s5, 1024, %s31, [#allocation3], 64, 64, 4
    $region25: #{mlp_forward.1} parent=1 // pred_fallthru
      _
    // Predicated region
    $region26: #{mlp_forward.1} parent=1 // pred_check
      _
    $region27: #{mlp_forward.1} parent=1 // pred_check_branch
      %38 = sbr.rel (0) target = $region29
    $region28: #{mlp_forward.1} parent=1 // pred_region
      _
    $region29: #{mlp_forward.1} parent=1 // pred_fallthru
      _
    // Predicated region
    $region30: #{mlp_forward.1} parent=1 // pred_check
      _
    $region31: #{mlp_forward.1} parent=1 // pred_check_branch
      %40 = sbr.rel (0) target = $region33
    $region32: #{mlp_forward.1} parent=1 // pred_region
      _
    $region33: #{mlp_forward.1} parent=1 // pred_fallthru
      _
    // Predicated region
    $region34: #{mlp_forward.1} parent=1 // pred_check
      _
    $region35: #{mlp_forward.1} parent=1 // pred_check_branch
      %42 = sbr.rel (0) target = $region37
    $region36: #{mlp_forward.1} parent=1 // pred_region
      _
    $region37: #{mlp_forward.1} parent=1 // pred_fallthru
      _
    // Predicated region
    $region38: #{mlp_forward.1} parent=1 // pred_check
      _
    $region39: #{mlp_forward.1} parent=1 // pred_check_branch
      %44 = sbr.rel (0) target = $region41
    $region40: #{mlp_forward.1} parent=1 // pred_region
      %45 = dma.done [#allocation3], 1024
    $region41: #{mlp_forward.1} parent=1 // pred_fallthru
      _
    %v47 = vld [vmem:[%s0] sm:$0xf]
    %v48 = vld [vmem:[%s1] sm:$0xf]
    %v49 = vld [vmem:[%s1 + $0x4] sm:$0xf]
    %v50 = vld [vmem:[%s2] sm:$0x1]
    %v52 = vlaneseq
    %v53 = vshrl.u32 %v52, 7
    %v54 = vsub.s32 0, %v53
    %v55 = vrot.slane %v50, %v54
    %v59 = vunpack.c.l.b16 %v48
    %v60 = vunpack.c.l.b16 %v49
    %v61 = vpack.c.b16 %v60, %v59
    %vm63 = vcmask 130048
    %v65 = vsel %vm63, %v47, 0
    %67 = vmatprep.subr.bf16.mxu0 0
    %68 = vmatpush1.bf16.msra.mxu0 %v61
    %69 = vmatprep.subr.bf16.mxu0 0
    %70 = vmatpush1.bf16.msra.mxu0 0
    %71 = vmatprep.subr.bf16.mxu0 0
    %72 = vmatpush1.bf16.msra.mxu0 0
    %73 = vmatprep.subr.bf16.mxu0 0
    %74 = vmatpush1.bf16.msra.mxu0 0
    %75 = vmatprep.subr.bf16.mxu0 0
    %76 = vmatpush1.bf16.msra.mxu0 0
    %77 = vmatprep.subr.bf16.mxu0 0
    %78 = vmatpush1.bf16.msra.mxu0 0
    %79 = vmatprep.subr.bf16.mxu0 0
    %80 = vmatpush1.bf16.msra.mxu0 0
    %81 = vmatprep.subr.bf16.mxu0 0
    %82 = vmatpush1.bf16.msra.mxu0 0
    %83 = vmatprep.subr.bf16.mxu0 0
    %84 = vmatpush1.bf16.msra.mxu0 0
    %85 = vmatprep.subr.bf16.mxu0 0
    %86 = vmatpush1.bf16.msra.mxu0 0
    %87 = vmatprep.subr.bf16.mxu0 0
    %88 = vmatpush1.bf16.msra.mxu0 0
    %89 = vmatprep.subr.bf16.mxu0 0
    %90 = vmatpush1.bf16.msra.mxu0 0
    %91 = vmatprep.subr.bf16.mxu0 0
    %92 = vmatpush1.bf16.msra.mxu0 0
    %93 = vmatprep.subr.bf16.mxu0 0
    %94 = vmatpush1.bf16.msra.mxu0 0
    %95 = vmatprep.subr.bf16.mxu0 0
    %96 = vmatpush1.bf16.msra.mxu0 0
    %97 = vmatprep.subr.bf16.mxu0 0
    %98 = vmatpush1.bf16.msra.mxu0 0
    %99 = vmatprep.mubr.bf16.mxu0 0
    %100 = vmatmul.mubr.bf16.gmra.mrb[0].mxu0 %v65
    %v101 = vpop.f32.mrb[0].mxu0
    %v102 = vadd.f32 %v55, %v101
    %v103 = vpop.f32.mrb[0].mxu0
    %v104 = vpop.f32.mrb[0].mxu0
    %v105 = vpop.f32.mrb[0].mxu0
    %106 = vdwg.mxu0
    %v107 = vmax.f32 %v102, 0.0
    %v108 = vpack.c.bf16 %v107, %v107
    %v109 = vld [vmem:[%s3] sm:$0xf]
    %v110 = vld [vmem:[%s3 + $0x4] sm:$0xf]
    %v111 = vld [vmem:[%s3 + $0x8] sm:$0xf]
    %v112 = vld [vmem:[%s3 + $0xc] sm:$0xf]
    %v113 = vld [vmem:[%s3 + $0x10] sm:$0xf]
    %v114 = vld [vmem:[%s3 + $0x14] sm:$0xf]
    %v115 = vld [vmem:[%s3 + $0x18] sm:$0xf]
    %v116 = vld [vmem:[%s3 + $0x1c] sm:$0xf]
    %v117 = vld [vmem:[%s3 + $0x20] sm:$0xf]
    %v118 = vld [vmem:[%s3 + $0x24] sm:$0xf]
    %v119 = vld [vmem:[%s3 + $0x28] sm:$0xf]
    %v120 = vld [vmem:[%s3 + $0x2c] sm:$0xf]
    %v121 = vld [vmem:[%s3 + $0x30] sm:$0xf]
    %v122 = vld [vmem:[%s3 + $0x34] sm:$0xf]
    %v123 = vld [vmem:[%s3 + $0x38] sm:$0xf]
    %v124 = vld [vmem:[%s3 + $0x3c] sm:$0xf]
    %v125 = vld [vmem:[%s4] sm:$0x1]
    %v127 = vlaneseq
    %v128 = vshrl.u32 %v127, 7
    %v129 = vsub.s32 0, %v128
    %v130 = vrot.slane %v125, %v129
    %v148 = vunpack.c.l.b16 %v109
    %v149 = vunpack.c.l.b16 %v110
    %v150 = vunpack.c.l.b16 %v111
    %v151 = vunpack.c.l.b16 %v112
    %v152 = vunpack.c.l.b16 %v113
    %v153 = vunpack.c.l.b16 %v114
    %v154 = vunpack.c.l.b16 %v115
    %v155 = vunpack.c.l.b16 %v116
    %v156 = vunpack.c.l.b16 %v117
    %v157 = vunpack.c.l.b16 %v118
    %v158 = vunpack.c.l.b16 %v119
    %v159 = vunpack.c.l.b16 %v120
    %v160 = vunpack.c.l.b16 %v121
    %v161 = vunpack.c.l.b16 %v122
    %v162 = vunpack.c.l.b16 %v123
    %v163 = vunpack.c.l.b16 %v124
    %v164 = vpack.c.b16 %v149, %v148
    %v165 = vpack.c.b16 %v151, %v150
    %v166 = vpack.c.b16 %v153, %v152
    %v167 = vpack.c.b16 %v155, %v154
    %v168 = vpack.c.b16 %v157, %v156
    %v169 = vpack.c.b16 %v159, %v158
    %v170 = vpack.c.b16 %v161, %v160
    %v171 = vpack.c.b16 %v163, %v162
    %180 = vmatprep.subr.bf16.mxu0 0
    %181 = vmatpush1.bf16.msra.mxu0 %v164
    %182 = vmatprep.subr.bf16.mxu0 0
    %183 = vmatpush1.bf16.msra.mxu0 %v165
    %184 = vmatprep.subr.bf16.mxu0 0
    %185 = vmatpush1.bf16.msra.mxu0 %v166
    %186 = vmatprep.subr.bf16.mxu0 0
    %187 = vmatpush1.bf16.msra.mxu0 %v167
    %188 = vmatprep.subr.bf16.mxu0 0
    %189 = vmatpush1.bf16.msra.mxu0 %v168
    %190 = vmatprep.subr.bf16.mxu0 0
    %191 = vmatpush1.bf16.msra.mxu0 %v169
    %192 = vmatprep.subr.bf16.mxu0 0
    %193 = vmatpush1.bf16.msra.mxu0 %v170
    %194 = vmatprep.subr.bf16.mxu0 0
    %195 = vmatpush1.bf16.msra.mxu0 %v171
    %196 = vmatprep.subr.bf16.mxu0 0
    %197 = vmatpush1.bf16.msra.mxu0 0
    %198 = vmatprep.subr.bf16.mxu0 0
    %199 = vmatpush1.bf16.msra.mxu0 0
    %200 = vmatprep.subr.bf16.mxu0 0
    %201 = vmatpush1.bf16.msra.mxu0 0
    %202 = vmatprep.subr.bf16.mxu0 0
    %203 = vmatpush1.bf16.msra.mxu0 0
    %204 = vmatprep.subr.bf16.mxu0 0
    %205 = vmatpush1.bf16.msra.mxu0 0
    %206 = vmatprep.subr.bf16.mxu0 0
    %207 = vmatpush1.bf16.msra.mxu0 0
    %208 = vmatprep.subr.bf16.mxu0 0
    %209 = vmatpush1.bf16.msra.mxu0 0
    %210 = vmatprep.subr.bf16.mxu0 0
    %211 = vmatpush1.bf16.msra.mxu0 0
    %212 = vmatprep.mubr.bf16.mxu0 0
    %213 = vmatmul.mubr.bf16.gmra.mrb[0].mxu0 %v108
    %v214 = vpop.f32.mrb[0].mxu0
    %v215 = vadd.f32 %v130, %v214
    %v216 = vpop.f32.mrb[0].mxu0
    %v217 = vpop.f32.mrb[0].mxu0
    %v218 = vpop.f32.mrb[0].mxu0
    %219 = vdwg.mxu0
    %v220 = vmax.f32 %v215, 0.0
    %v221 = vpack.c.bf16 %v220, %v220
    %v222 = vld [vmem:[#allocation2] sm:$0xf]
    %v223 = vld [vmem:[#allocation2 + $0x4] sm:$0xf]
    %v224 = vld [vmem:[#allocation2 + $0x8] sm:$0xf]
    %v225 = vld [vmem:[#allocation2 + $0xc] sm:$0xf]
    %v226 = vld [vmem:[#allocation2 + $0x10] sm:$0xf]
    %v227 = vld [vmem:[#allocation2 + $0x14] sm:$0xf]
    %v228 = vld [vmem:[#allocation2 + $0x18] sm:$0xf]
    %v229 = vld [vmem:[#allocation2 + $0x1c] sm:$0xf]
    %v230 = vld [vmem:[#allocation2 + $0x20] sm:$0xf]
    %v231 = vld [vmem:[#allocation2 + $0x24] sm:$0xf]
    %v232 = vld [vmem:[#allocation2 + $0x28] sm:$0xf]
    %v233 = vld [vmem:[#allocation2 + $0x2c] sm:$0xf]
    %v234 = vld [vmem:[#allocation2 + $0x30] sm:$0xf]
    %v235 = vld [vmem:[#allocation2 + $0x34] sm:$0xf]
    %v236 = vld [vmem:[#allocation2 + $0x38] sm:$0xf]
    %v237 = vld [vmem:[#allocation2 + $0x3c] sm:$0xf]
    %v238 = vld [vmem:[%s6] sm:$0x1]
    %v240 = vlaneseq
    %v241 = vshrl.u32 %v240, 7
    %v242 = vsub.s32 0, %v241
    %v243 = vrot.slane %v238, %v242
    %v261 = vunpack.c.l.b16 %v222
    %v262 = vunpack.c.l.b16 %v223
    %v263 = vunpack.c.l.b16 %v224
    %v264 = vunpack.c.l.b16 %v225
    %v265 = vunpack.c.l.b16 %v226
    %v266 = vunpack.c.l.b16 %v227
    %v267 = vunpack.c.l.b16 %v228
    %v268 = vunpack.c.l.b16 %v229
    %v269 = vunpack.c.l.b16 %v230
    %v270 = vunpack.c.l.b16 %v231
    %v271 = vunpack.c.l.b16 %v232
    %v272 = vunpack.c.l.b16 %v233
    %v273 = vunpack.c.l.b16 %v234
    %v274 = vunpack.c.l.b16 %v235
    %v275 = vunpack.c.l.b16 %v236
    %v276 = vunpack.c.l.b16 %v237
    %v277 = vpack.c.b16 %v262, %v261
    %v278 = vpack.c.b16 %v264, %v263
    %v279 = vpack.c.b16 %v266, %v265
    %v280 = vpack.c.b16 %v268, %v267
    %v281 = vpack.c.b16 %v270, %v269
    %v282 = vpack.c.b16 %v272, %v271
    %v283 = vpack.c.b16 %v274, %v273
    %v284 = vpack.c.b16 %v276, %v275
    %293 = vmatprep.subr.bf16.mxu0 0
    %294 = vmatpush1.bf16.msra.mxu0 %v277
    %295 = vmatprep.subr.bf16.mxu0 0
    %296 = vmatpush1.bf16.msra.mxu0 %v278
    %297 = vmatprep.subr.bf16.mxu0 0
    %298 = vmatpush1.bf16.msra.mxu0 %v279
    %299 = vmatprep.subr.bf16.mxu0 0
    %300 = vmatpush1.bf16.msra.mxu0 %v280
    %301 = vmatprep.subr.bf16.mxu0 0
    %302 = vmatpush1.bf16.msra.mxu0 %v281
    %303 = vmatprep.subr.bf16.mxu0 0
    %304 = vmatpush1.bf16.msra.mxu0 %v282
    %305 = vmatprep.subr.bf16.mxu0 0
    %306 = vmatpush1.bf16.msra.mxu0 %v283
    %307 = vmatprep.subr.bf16.mxu0 0
    %308 = vmatpush1.bf16.msra.mxu0 %v284
    %309 = vmatprep.subr.bf16.mxu0 0
    %310 = vmatpush1.bf16.msra.mxu0 0
    %311 = vmatprep.subr.bf16.mxu0 0
    %312 = vmatpush1.bf16.msra.mxu0 0
    %313 = vmatprep.subr.bf16.mxu0 0
    %314 = vmatpush1.bf16.msra.mxu0 0
    %315 = vmatprep.subr.bf16.mxu0 0
    %316 = vmatpush1.bf16.msra.mxu0 0
    %317 = vmatprep.subr.bf16.mxu0 0
    %318 = vmatpush1.bf16.msra.mxu0 0
    %319 = vmatprep.subr.bf16.mxu0 0
    %320 = vmatpush1.bf16.msra.mxu0 0
    %321 = vmatprep.subr.bf16.mxu0 0
    %322 = vmatpush1.bf16.msra.mxu0 0
    %323 = vmatprep.subr.bf16.mxu0 0
    %324 = vmatpush1.bf16.msra.mxu0 0
    %325 = vmatprep.mubr.bf16.mxu0 0
    %326 = vmatmul.mubr.bf16.gmra.mrb[0].mxu0 %v221
    %v327 = vpop.f32.mrb[0].mxu0
    %v328 = vadd.f32 %v243, %v327
    %v329 = vpop.f32.mrb[0].mxu0
    %v330 = vpop.f32.mrb[0].mxu0
    %v331 = vpop.f32.mrb[0].mxu0
    %332 = vdwg.mxu0
    %v333 = vmax.f32 %v328, 0.0
    %v334 = vpack.c.bf16 %v333, %v333
    %v335 = vld [vmem:[%s7] sm:$0xf]
    %v336 = vld [vmem:[%s7 + $0x4] sm:$0xf]
    %v337 = vld [vmem:[%s7 + $0x8] sm:$0xf]
    %v338 = vld [vmem:[%s7 + $0xc] sm:$0xf]
    %v339 = vld [vmem:[%s7 + $0x10] sm:$0xf]
    %v340 = vld [vmem:[%s7 + $0x14] sm:$0xf]
    %v341 = vld [vmem:[%s7 + $0x18] sm:$0xf]
    %v342 = vld [vmem:[%s7 + $0x1c] sm:$0xf]
    %v343 = vld [vmem:[%s7 + $0x20] sm:$0xf]
    %v344 = vld [vmem:[%s7 + $0x24] sm:$0xf]
    %v345 = vld [vmem:[%s7 + $0x28] sm:$0xf]
    %v346 = vld [vmem:[%s7 + $0x2c] sm:$0xf]
    %v347 = vld [vmem:[%s7 + $0x30] sm:$0xf]
    %v348 = vld [vmem:[%s7 + $0x34] sm:$0xf]
    %v349 = vld [vmem:[%s7 + $0x38] sm:$0xf]
    %v350 = vld [vmem:[%s7 + $0x3c] sm:$0xf]
    %v351 = vld [vmem:[%s8] sm:$0x1]
    %v353 = vlaneseq
    %v354 = vshrl.u32 %v353, 7
    %v355 = vsub.s32 0, %v354
    %v356 = vrot.slane %v351, %v355
    %v374 = vunpack.c.l.b16 %v335
    %v375 = vunpack.c.l.b16 %v336
    %v376 = vunpack.c.l.b16 %v337
    %v377 = vunpack.c.l.b16 %v338
    %v378 = vunpack.c.l.b16 %v339
    %v379 = vunpack.c.l.b16 %v340
    %v380 = vunpack.c.l.b16 %v341
    %v381 = vunpack.c.l.b16 %v342
    %v382 = vunpack.c.l.b16 %v343
    %v383 = vunpack.c.l.b16 %v344
    %v384 = vunpack.c.l.b16 %v345
    %v385 = vunpack.c.l.b16 %v346
    %v386 = vunpack.c.l.b16 %v347
    %v387 = vunpack.c.l.b16 %v348
    %v388 = vunpack.c.l.b16 %v349
    %v389 = vunpack.c.l.b16 %v350
    %v390 = vpack.c.b16 %v375, %v374
    %v391 = vpack.c.b16 %v377, %v376
    %v392 = vpack.c.b16 %v379, %v378
    %v393 = vpack.c.b16 %v381, %v380
    %v394 = vpack.c.b16 %v383, %v382
    %v395 = vpack.c.b16 %v385, %v384
    %v396 = vpack.c.b16 %v387, %v386
    %v397 = vpack.c.b16 %v389, %v388
    %406 = vmatprep.subr.bf16.mxu0 0
    %407 = vmatpush1.bf16.msra.mxu0 %v390
    %408 = vmatprep.subr.bf16.mxu0 0
    %409 = vmatpush1.bf16.msra.mxu0 %v391
    %410 = vmatprep.subr.bf16.mxu0 0
    %411 = vmatpush1.bf16.msra.mxu0 %v392
    %412 = vmatprep.subr.bf16.mxu0 0
    %413 = vmatpush1.bf16.msra.mxu0 %v393
    %414 = vmatprep.subr.bf16.mxu0 0
    %415 = vmatpush1.bf16.msra.mxu0 %v394
    %416 = vmatprep.subr.bf16.mxu0 0
    %417 = vmatpush1.bf16.msra.mxu0 %v395
    %418 = vmatprep.subr.bf16.mxu0 0
    %419 = vmatpush1.bf16.msra.mxu0 %v396
    %420 = vmatprep.subr.bf16.mxu0 0
    %421 = vmatpush1.bf16.msra.mxu0 %v397
    %422 = vmatprep.subr.bf16.mxu0 0
    %423 = vmatpush1.bf16.msra.mxu0 0
    %424 = vmatprep.subr.bf16.mxu0 0
    %425 = vmatpush1.bf16.msra.mxu0 0
    %426 = vmatprep.subr.bf16.mxu0 0
    %427 = vmatpush1.bf16.msra.mxu0 0
    %428 = vmatprep.subr.bf16.mxu0 0
    %429 = vmatpush1.bf16.msra.mxu0 0
    %430 = vmatprep.subr.bf16.mxu0 0
    %431 = vmatpush1.bf16.msra.mxu0 0
    %432 = vmatprep.subr.bf16.mxu0 0
    %433 = vmatpush1.bf16.msra.mxu0 0
    %434 = vmatprep.subr.bf16.mxu0 0
    %435 = vmatpush1.bf16.msra.mxu0 0
    %436 = vmatprep.subr.bf16.mxu0 0
    %437 = vmatpush1.bf16.msra.mxu0 0
    %438 = vmatprep.mubr.bf16.mxu0 0
    %439 = vmatmul.mubr.bf16.gmra.mrb[0].mxu0 %v334
    %v440 = vpop.f32.mrb[0].mxu0
    %v441 = vadd.f32 %v356, %v440
    %v442 = vpop.f32.mrb[0].mxu0
    %v443 = vpop.f32.mrb[0].mxu0
    %v444 = vpop.f32.mrb[0].mxu0
    %445 = vdwg.mxu0
    %vm446 = vcmask 31744
    %447 = vst.msk [vmem:[%s9] sm:$0xff] %vm446, %v441
    // Predicated region
    $region42: #{mlp_forward.1} parent=1 // pred_check
      _
    $region43: #{mlp_forward.1} parent=1 // pred_check_branch
      %449 = sbr.rel (0) target = $region45
    $region44: #{mlp_forward.1} parent=1 // pred_region
      _
    $region45: #{mlp_forward.1} parent=1 // pred_fallthru
      _
    // Predicated region
    $region46: #{mlp_forward.1} parent=1 // pred_check
      _
    $region47: #{mlp_forward.1} parent=1 // pred_check_branch
      %451 = sbr.rel (0) target = $region49
    $region48: #{mlp_forward.1} parent=1 // pred_region
      _
    $region49: #{mlp_forward.1} parent=1 // pred_fallthru
      _
    %452 = vsyncpa [#allocation3], 1

</llo_original>
